<compile_context>
chip_gen: v5e
topology: v5e:2x2
jax: 0.10.0
libtpu: 0.0.40
codegen_flags: <defaults>
</compile_context>

<pallas_src>
import numpy as np
import jax
import jax.numpy as jnp
from jax import lax
from jax.experimental import pallas as pl
from jax.experimental.pallas import tpu as pltpu


def make_relative_position_index(window_size):
    """Replicates the PyTorch __init__ buffer construction (host-side glue)."""
    wh, ww = window_size
    num_relative_distance = (2 * wh - 1) * (2 * ww - 1) + 3
    coords_h = np.arange(wh)
    coords_w = np.arange(ww)
    coords = np.stack(np.meshgrid(coords_h, coords_w, indexing="ij"))  # (2, Wh, Ww)
    coords_flatten = coords.reshape(2, -1)                             # (2, Wh*Ww)
    relative_coords = coords_flatten[:, :, None] - coords_flatten[:, None, :]
    relative_coords = relative_coords.transpose(1, 2, 0).copy()        # (Wh*Ww, Wh*Ww, 2)
    relative_coords[:, :, 0] += wh - 1
    relative_coords[:, :, 1] += ww - 1
    relative_coords[:, :, 0] *= 2 * ww - 1
    n = wh * ww + 1
    relative_position_index = np.zeros((n, n), dtype=np.int64)
    relative_position_index[1:, 1:] = relative_coords.sum(-1)
    relative_position_index[0, 0:] = num_relative_distance - 3
    relative_position_index[0:, 0] = num_relative_distance - 2
    relative_position_index[0, 0] = num_relative_distance - 1
    return relative_position_index.astype(np.int32), num_relative_distance


def _rpb_kernel(idx_ref, tab_hi_ref, tab_lo_ref, iota_ref, out_ref, oh_ref):
    # idx_ref:    (1, TILE_NN)   i32   lane-dense flattened gather indices
    # tab_hi_ref: (NC, H, KC)    bf16  bf16(table), chunked along D, pre-transposed
    # tab_lo_ref: (NC, H, KC)    bf16  bf16(table - hi) residual, same layout
    # iota_ref:   (KC, TILE_NN)  i32   chunk-row iota (grid/loop invariant input)
    # out_ref:    (H, TILE_NN)   f32   lane-dense output tile (doubles as accumulator)
    # oh_ref:     (KC, TILE_NN)  bf16  one-hot chunk scratch (bounded working set)
    kc = oh_ref.shape[0]
    num_chunks = tab_hi_ref.shape[0]

    idx = idx_ref[...]                                   # (1, TILE_NN) i32
    out_ref[...] = jnp.zeros_like(out_ref)

    def chunk_body(k, carry):
        base = k * kc
        # one-hot[r, c] = (idx[c] - base == r); compare in i32, pack to bf16 last
        # (bf16 one-hot is exact: each column holds a single 1.0).
        oh_ref[...] = (iota_ref[...] == (idx - base)).astype(jnp.bfloat16)
        oh = oh_ref[...]                                 # (KC, TILE_NN) bf16
        # MXU gather, f32 accumulation: (H, KC) @ (KC, TILE_NN) -> (H, TILE_NN).
        out_ref[...] += jnp.dot(tab_hi_ref[k], oh, preferred_element_type=jnp.float32)
        out_ref[...] += jnp.dot(tab_lo_ref[k], oh, preferred_element_type=jnp.float32)
        return carry

    lax.fori_loop(0, num_chunks, chunk_body, 0, unroll=True)


def relative_position_bias(table, rel_pos_index, window_size, num_heads,
                           *, tile_nn=2048, k_chunk=256):
    """table: (num_relative_distance, num_heads) f32; returns (num_heads, N, N) f32."""
    wh, ww = window_size
    n = wh * ww + 1
    nn = n * n
    d = table.shape[0]
    assert table.shape[1] == num_heads, (table.shape, num_heads)
    assert tile_nn % 128 == 0 and k_chunk % 128 == 0, (tile_nn, k_chunk)

    # Clamp the lane tile so the parallel grid has >= 2 steps (both v7x TCs get
    # work) while defaulting to 2048 lanes for real window sizes.
    half = pl.cdiv(pl.cdiv(nn, 2), 128) * 128
    tile = max(128, min(tile_nn, half))
    assert tile % 128 == 0, tile
    nn_pad = pl.cdiv(nn, tile) * tile
    d_pad = pl.cdiv(d, k_chunk) * k_chunk
    nc = d_pad // k_chunk

    # Lane-dense (1, NN_pad) index row; padding columns gather (valid) row 0 and
    # are discarded by the final slice.
    idx_flat = jnp.zeros((1, nn_pad), dtype=jnp.int32)
    idx_flat = idx_flat.at[0, :nn].set(rel_pos_index.reshape(-1).astype(jnp.int32))

    # One-time layout work outside the kernel: bf16 hi/lo split of the table,
    # transpose (D, H) -> (H, D), zero-pad D, and chunk along D -> (NC, H, KC).
    table_f32 = table.astype(jnp.float32)
    tab_hi = table_f32.astype(jnp.bfloat16)
    tab_lo = (table_f32 - tab_hi.astype(jnp.float32)).astype(jnp.bfloat16)

    def prep(t):
        t = jnp.transpose(t, (1, 0))                         # (H, D)
        t = jnp.pad(t, ((0, 0), (0, d_pad - d)))             # (H, D_pad)
        t = t.reshape(num_heads, nc, k_chunk)
        return jnp.transpose(t, (1, 0, 2))                   # (NC, H, KC)

    tab_hi_t = prep(tab_hi)
    tab_lo_t = prep(tab_lo)

    # Grid/loop-invariant chunk-row iota, passed as a resident input so it is
    # never regenerated inside the kernel (and is megacore-safe).
    iota_in = lax.broadcasted_iota(jnp.int32, (k_chunk, tile), 0)

    out = pl.pallas_call(
        _rpb_kernel,
        out_shape=jax.ShapeDtypeStruct((num_heads, nn_pad), jnp.float32),
        grid_spec=pltpu.PrefetchScalarGridSpec(
            num_scalar_prefetch=0,
            grid=(nn_pad // tile,),
            in_specs=[
                pl.BlockSpec((1, tile), lambda i: (0, i)),             # idx tile
                pl.BlockSpec((nc, num_heads, k_chunk), lambda i: (0, 0, 0)),  # table hi
                pl.BlockSpec((nc, num_heads, k_chunk), lambda i: (0, 0, 0)),  # table lo
                pl.BlockSpec((k_chunk, tile), lambda i: (0, 0)),       # resident iota
            ],
            out_specs=pl.BlockSpec((num_heads, tile), lambda i: (0, i)),
            scratch_shapes=[pltpu.VMEM((k_chunk, tile), jnp.bfloat16)],  # one-hot chunk
        ),
        compiler_params=pltpu.CompilerParams(
            dimension_semantics=("parallel",)),
    )(idx_flat, tab_hi_t, tab_lo_t, iota_in)

    # Matches the module's (H, N, N) contract. A fused consumer should take the
    # padded (H, NN_pad) slab directly to skip this extra HBM copy.
    return out[:, :nn].reshape(num_heads, n, n)


if __name__ == "__main__":
    window_size = (4, 4)
    num_heads = 8

    rel_pos_index_np, num_relative_distance = make_relative_position_index(window_size)
    rel_pos_index = jnp.asarray(rel_pos_index_np)

    # nn.Parameter is zero-init in the module; use deterministic random values
    # here so the test is non-trivial.
    key = jax.random.PRNGKey(0)
    table = jax.random.normal(key, (num_relative_distance, num_heads), dtype=jnp.float32)

    out = relative_position_bias(table, rel_pos_index, window_size, num_heads)
    out = jax.block_until_ready(out)

    # Pure-JAX reference of the PyTorch forward.
    n = window_size[0] * window_size[1] + 1
    ref = table[rel_pos_index.reshape(-1)].reshape(n, n, num_heads).transpose(2, 0, 1)

    assert out.shape == (num_heads, n, n), out.shape
    # bf16 hi/lo split keeps the gathered values within ~1e-5 of exact f32.
    max_err = float(jnp.max(jnp.abs(out - ref)))
    assert jnp.allclose(out, ref, atol=1e-4), max_err
    print("KERNEL_OK")
</pallas_src>

<mosaic_0001>
module attributes {stable_mosaic.version = 11 : i64} {
  func.func @_rpb_kernel(%arg0: i32, %arg1: memref<1x256xi32, #tpu.memory_space<vmem>>, %arg2: memref<1x8x256xbf16, #tpu.memory_space<vmem>>, %arg3: memref<1x8x256xbf16, #tpu.memory_space<vmem>>, %arg4: memref<256x256xi32, #tpu.memory_space<vmem>>, %arg5: memref<8x256xf32, #tpu.memory_space<vmem>>, %arg6: memref<256x256xbf16, #tpu.memory_space<vmem>>) attributes {dimension_semantics = [#tpu.dimension_semantics<parallel>], iteration_bounds = array<i64: 2>, scalar_prefetch = 0 : i64, scratch_operands = 1 : i64, tpu.core_type = #tpu.core_type<tc>, window_params = [{transform_indices = @transform_0, window_bounds = array<i64: 1, 256>}, {pipeline_mode = #tpu.pipeline_mode<synchronous>, transform_indices = @transform_1, window_bounds = array<i64: 1, 8, 256>}, {pipeline_mode = #tpu.pipeline_mode<synchronous>, transform_indices = @transform_2, window_bounds = array<i64: 1, 8, 256>}, {pipeline_mode = #tpu.pipeline_mode<synchronous>, transform_indices = @transform_3, window_bounds = array<i64: 256, 256>}, {transform_indices = @transform_4, window_bounds = array<i64: 8, 256>}]} {
    %c0 = arith.constant 0 : index
    %c0_0 = arith.constant 0 : index
    %0 = vector.load %arg1[%c0, %c0_0] : memref<1x256xi32, #tpu.memory_space<vmem>>, vector<1x256xi32>
    %cst = arith.constant 0.000000e+00 : f32
    %1 = vector.broadcast %cst : f32 to vector<8x256xf32>
    %c0_1 = arith.constant 0 : index
    %c0_2 = arith.constant 0 : index
    %2 = vector.load %arg5[%c0_1, %c0_2] : memref<8x256xf32, #tpu.memory_space<vmem>>, vector<8x256xf32>
    tpu.vector_store %arg5[%c0_1, %c0_2], %1 {strides = array<i32>} : memref<8x256xf32, #tpu.memory_space<vmem>>, vector<8x256xf32>,
    %c0_i32 = arith.constant 0 : i32
    %c256_i32 = arith.constant 256 : i32
    %3 = arith.muli %c0_i32, %c256_i32 : i32
    %c0_3 = arith.constant 0 : index
    %c0_4 = arith.constant 0 : index
    %4 = vector.load %arg4[%c0_3, %c0_4] : memref<256x256xi32, #tpu.memory_space<vmem>>, vector<256x256xi32>
    %5 = vector.broadcast %3 : i32 to vector<1x256xi32>
    %6 = arith.subi %0, %5 : vector<1x256xi32>
    %7 = vector.broadcast %6 : vector<1x256xi32> to vector<256x256xi32>
    %8 = arith.cmpi eq, %4, %7 : vector<256x256xi32>
    %9 = arith.extui %8 : vector<256x256xi1> to vector<256x256xi32>
    %10 = arith.sitofp %9 : vector<256x256xi32> to vector<256x256xf32>
    %11 = arith.truncf %10 : vector<256x256xf32> to vector<256x256xbf16>
    %c0_5 = arith.constant 0 : index
    %c0_6 = arith.constant 0 : index
    %12 = vector.load %arg6[%c0_5, %c0_6] : memref<256x256xbf16, #tpu.memory_space<vmem>>, vector<256x256xbf16>
    tpu.vector_store %arg6[%c0_5, %c0_6], %11 {strides = array<i32>} : memref<256x256xbf16, #tpu.memory_space<vmem>>, vector<256x256xbf16>,
    %c0_7 = arith.constant 0 : index
    %c0_8 = arith.constant 0 : index
    %13 = vector.load %arg6[%c0_7, %c0_8] : memref<256x256xbf16, #tpu.memory_space<vmem>>, vector<256x256xbf16>
    %c0_9 = arith.constant 0 : index
    %c0_10 = arith.constant 0 : index
    %14 = vector.load %arg5[%c0_9, %c0_10] : memref<8x256xf32, #tpu.memory_space<vmem>>, vector<8x256xf32>
    %15 = arith.index_cast %c0_i32 : i32 to index
    %c0_11 = arith.constant 0 : index
    %c0_12 = arith.constant 0 : index
    %16 = vector.load %arg2[%15, %c0_11, %c0_12] : memref<1x8x256xbf16, #tpu.memory_space<vmem>>, vector<1x8x256xbf16>
    %17 = vector.shape_cast %16 : vector<1x8x256xbf16> to vector<8x256xbf16>
    %cst_13 = arith.constant dense<0.000000e+00> : vector<8x256xf32>
    %18 = tpu.matmul %17, %13, %cst_13 {dimension_numbers = #tpu.dot_dimension_numbers<[1], [0], [0], [1], [0, 0, 1, 1], [], []>} : vector<8x256xbf16>, vector<256x256xbf16>, vector<8x256xf32> -> vector<8x256xf32>
    %19 = arith.addf %14, %18 : vector<8x256xf32>
    %c0_14 = arith.constant 0 : index
    %c0_15 = arith.constant 0 : index
    %20 = vector.load %arg5[%c0_14, %c0_15] : memref<8x256xf32, #tpu.memory_space<vmem>>, vector<8x256xf32>
    tpu.vector_store %arg5[%c0_14, %c0_15], %19 {strides = array<i32>} : memref<8x256xf32, #tpu.memory_space<vmem>>, vector<8x256xf32>,
    %c0_16 = arith.constant 0 : index
    %c0_17 = arith.constant 0 : index
    %21 = vector.load %arg5[%c0_16, %c0_17] : memref<8x256xf32, #tpu.memory_space<vmem>>, vector<8x256xf32>
    %22 = arith.index_cast %c0_i32 : i32 to index
    %c0_18 = arith.constant 0 : index
    %c0_19 = arith.constant 0 : index
    %23 = vector.load %arg3[%22, %c0_18, %c0_19] : memref<1x8x256xbf16, #tpu.memory_space<vmem>>, vector<1x8x256xbf16>
    %24 = vector.shape_cast %23 : vector<1x8x256xbf16> to vector<8x256xbf16>
    %cst_20 = arith.constant dense<0.000000e+00> : vector<8x256xf32>
    %25 = tpu.matmul %24, %13, %cst_20 {dimension_numbers = #tpu.dot_dimension_numbers<[1], [0], [0], [1], [0, 0, 1, 1], [], []>} : vector<8x256xbf16>, vector<256x256xbf16>, vector<8x256xf32> -> vector<8x256xf32>
    %26 = arith.addf %21, %25 : vector<8x256xf32>
    %c0_21 = arith.constant 0 : index
    %c0_22 = arith.constant 0 : index
    %27 = vector.load %arg5[%c0_21, %c0_22] : memref<8x256xf32, #tpu.memory_space<vmem>>, vector<8x256xf32>
    tpu.vector_store %arg5[%c0_21, %c0_22], %26 {strides = array<i32>} : memref<8x256xf32, #tpu.memory_space<vmem>>, vector<8x256xf32>,
    %c1_i32 = arith.constant 1 : i32
    return
  }
  func.func @transform_0(%arg0: i32) -> (i32, i32) {
    %c0_i32 = arith.constant 0 : i32
    %c0_i32_0 = arith.constant 0 : i32
    return %c0_i32, %arg0 : i32, i32
  }
  func.func @transform_1(%arg0: i32) -> (i32, i32, i32) {
    %c0_i32 = arith.constant 0 : i32
    %c0_i32_0 = arith.constant 0 : i32
    %c0_i32_1 = arith.constant 0 : i32
    %c0_i32_2 = arith.constant 0 : i32
    return %c0_i32, %c0_i32_0, %c0_i32_1 : i32, i32, i32
  }
  func.func @transform_2(%arg0: i32) -> (i32, i32, i32) {
    %c0_i32 = arith.constant 0 : i32
    %c0_i32_0 = arith.constant 0 : i32
    %c0_i32_1 = arith.constant 0 : i32
    %c0_i32_2 = arith.constant 0 : i32
    return %c0_i32, %c0_i32_0, %c0_i32_1 : i32, i32, i32
  }
  func.func @transform_3(%arg0: i32) -> (i32, i32) {
    %c0_i32 = arith.constant 0 : i32
    %c0_i32_0 = arith.constant 0 : i32
    %c0_i32_1 = arith.constant 0 : i32
    return %c0_i32, %c0_i32_0 : i32, i32
  }
  func.func @transform_4(%arg0: i32) -> (i32, i32) {
    %c0_i32 = arith.constant 0 : i32
    %c0_i32_0 = arith.constant 0 : i32
    return %c0_i32, %arg0 : i32, i32
  }
}

</mosaic_0001>

<llo_original>
// kernel: tpu_custom_call.1
$region0: #{tpu_custom_call.1}
  #allocation0 [shape = 'u32[]', space=smem, size = 0x4, offset = 0x4, fixed_abs, tag = 'smem constant byte address 0x4 - core index']
  #allocation1 [shape = 'u32[72,128]{1,0:T(1,128)}', space=vmem, size = 0x9000, scoped, tag = 'internal scratch']
  #allocation2 [shape = 'bf16[256,256]{1,0:T(8,128)(2,1)}', space=vmem, size = 0x20000, scoped, tag = 'scratch operand']
  %s0 = inlined_call_operand.hbm [shape: s32[1,512], index: 0, kind: input, shape index: {}]
  %s1 = inlined_call_operand.hbm [shape: bf16[1,8,256], index: 1, kind: input, shape index: {}]
  %s2 = inlined_call_operand.hbm [shape: bf16[1,8,256], index: 2, kind: input, shape index: {}]
  %s3 = inlined_call_operand.hbm [shape: s32[256,256], index: 3, kind: input, shape index: {}]
  %s4 = inlined_call_operand.hbm [shape: f32[8,512], index: 4, kind: output, shape index: {}]
  %s5 = sld [smem:[#allocation0]]
  $region65: #{tpu_custom_call.1} parent=0
    _
  %s7 = ssub.s32 1, %s5
  %s8 = scalar_select 0, %s7, %s5
  $region1: #{tpu_custom_call.1} parent=0
    #allocation3 [shape = 'u8[2048]{0}', space=vmem, size = 0x800, scoped, tag = 'input window, operand 0']
    #allocation4 [shape = 's32[2]{0}', space=sflag, size = 0x8, scoped, tag = 'scoped memory for tpu_custom_call.1']
    #allocation5 [shape = 's32[2]{0}', space=sflag, size = 0x8, scoped, tag = 'scoped memory for tpu_custom_call.1']
    #allocation6 [shape = 'u8[4096]{0}', space=vmem, size = 0x1000, scoped, tag = 'input window, operand 1, single buffered']
    #allocation7 [shape = 's32[1]{0}', space=sflag, size = 0x4, scoped, tag = 'scoped memory for tpu_custom_call.1']
    #allocation8 [shape = 'u8[4096]{0}', space=vmem, size = 0x1000, scoped, tag = 'input window, operand 2, single buffered']
    #allocation9 [shape = 'u8[262144]{0}', space=vmem, size = 0x40000, scoped, tag = 'input window, operand 3, single buffered']
    #allocation10 [shape = 's32[1]{0}', space=sflag, size = 0x4, scoped, tag = 'scoped memory for tpu_custom_call.1']
    #allocation11 [shape = 'u8[16384]{0}', space=vmem, size = 0x4000, scoped, tag = 'output window, operand 0']
    %9 = vsyncpa [#allocation4], 0
    %s10 = scalar_lea.sflag [#allocation4], 1
    %11 = vsyncpa %s10, 0
    %12 = vsyncpa [#allocation7], 0
    %13 = vsyncpa [#allocation10], 0
    %14 = vsyncpa [#allocation5], 0
    %s15 = scalar_lea.sflag [#allocation5], 1
    %16 = vsyncpa %s15, 0
    loop: start=0, step=1, limit=4
    $region2: #{tpu_custom_call.1} parent=1 // loop_pre_header
      _
    $region3: #{tpu_custom_call.1} parent=1 // loop_header
      %s18 = sphi 0, %s22
      %p19 = scmp.ge.s32.totalorder %s18, 4
      %s28 = sphi 0, %s30
      %s31 = sphi 0, %s28
      %s32 = sphi 0, %s31
      %s48 = sphi 0, %s32
      %s52 = sphi 0, %s52
      %s54 = sphi 0, %s52
      %s55 = sphi 0, %s54
      %s69 = sphi 0, %s55
      %s73 = sphi 0, %s73
      %s75 = sphi 0, %s73
      %s76 = sphi 0, %s75
      %s90 = sphi 0, %s76
      %s94 = sphi 0, %s94
      %s96 = sphi 0, %s94
      %s97 = sphi 0, %s96
      %s111 = sphi 0, %s97
      %s117 = sphi 0, %s119
      %s120 = sphi 0, %s117
      %s121 = sphi 0, %s120
      %s137 = sphi 0, %s121
    $region4: #{tpu_custom_call.1} parent=1 // loop_header_branch
      %21 = sbr.rel (%p19) target = $region8
    $region5: #{tpu_custom_call.1} parent=1 // loop_body
      %s23 = ssub.s32 %s18, 1
      %s24 = ssub.s32 %s18, 2
      %s25 = sadd.s32 %s18, 1
      %s26 = ssub.s32 %s18, %s25
      %p27 = scmp.eq.s32.totalorder %s26, 0
      %s29 = sadd.s32 %s28, 1
      %s30 = scalar_select %p27, %s28, %s29
      %p33 = pneg %p27
      %p34 = scmp.eq.s32.totalorder %s18, 1
      %p35 = por %p33, %p34
      %p36 = scmp.ne.s32.totalorder %s28, %s31
      %p37 = scmp.eq.s32.totalorder %s18, 0
      %p38 = por %p36, %p37
      %p39 = scmp.ne.s32.totalorder %s28, %s31
      %p40 = scmp.eq.s32.totalorder %s23, 1
      %p41 = por %p39, %p40
      %p42 = scmp.ne.s32.totalorder %s31, %s32
      %p43 = scmp.eq.s32.totalorder %s23, 0
      %p44 = por %p42, %p43
      %p45 = scmp.ne.s32.totalorder %s31, %s32
      %p46 = scmp.eq.s32.totalorder %s24, 1
      %p47 = por %p45, %p46
      %p49 = scmp.ne.s32.totalorder %s32, %s48
      %p50 = scmp.eq.s32.totalorder %s24, 0
      %p51 = por %p49, %p50
      %s53 = sadd.s32 %s52, 1
      %p56 = scmp.eq.s32.totalorder %s18, 1
      %p57 = scmp.ne.s32.totalorder %s52, %s54
      %p58 = scmp.eq.s32.totalorder %s18, 0
      %p59 = por %p57, %p58
      %p60 = scmp.ne.s32.totalorder %s52, %s54
      %p61 = scmp.eq.s32.totalorder %s23, 1
      %p62 = por %p60, %p61
      %p63 = scmp.ne.s32.totalorder %s54, %s55
      %p64 = scmp.eq.s32.totalorder %s23, 0
      %p65 = por %p63, %p64
      %p66 = scmp.ne.s32.totalorder %s54, %s55
      %p67 = scmp.eq.s32.totalorder %s24, 1
      %p68 = por %p66, %p67
      %p70 = scmp.ne.s32.totalorder %s55, %s69
      %p71 = scmp.eq.s32.totalorder %s24, 0
      %p72 = por %p70, %p71
      %s74 = sadd.s32 %s73, 1
      %p77 = scmp.eq.s32.totalorder %s18, 1
      %p78 = scmp.ne.s32.totalorder %s73, %s75
      %p79 = scmp.eq.s32.totalorder %s18, 0
      %p80 = por %p78, %p79
      %p81 = scmp.ne.s32.totalorder %s73, %s75
      %p82 = scmp.eq.s32.totalorder %s23, 1
      %p83 = por %p81, %p82
      %p84 = scmp.ne.s32.totalorder %s75, %s76
      %p85 = scmp.eq.s32.totalorder %s23, 0
      %p86 = por %p84, %p85
      %p87 = scmp.ne.s32.totalorder %s75, %s76
      %p88 = scmp.eq.s32.totalorder %s24, 1
      %p89 = por %p87, %p88
      %p91 = scmp.ne.s32.totalorder %s76, %s90
      %p92 = scmp.eq.s32.totalorder %s24, 0
      %p93 = por %p91, %p92
      %s95 = sadd.s32 %s94, 1
      %p98 = scmp.eq.s32.totalorder %s18, 1
      %p99 = scmp.ne.s32.totalorder %s94, %s96
      %p100 = scmp.eq.s32.totalorder %s18, 0
      %p101 = por %p99, %p100
      %p102 = scmp.ne.s32.totalorder %s94, %s96
      %p103 = scmp.eq.s32.totalorder %s23, 1
      %p104 = por %p102, %p103
      %p105 = scmp.ne.s32.totalorder %s96, %s97
      %p106 = scmp.eq.s32.totalorder %s23, 0
      %p107 = por %p105, %p106
      %p108 = scmp.ne.s32.totalorder %s96, %s97
      %p109 = scmp.eq.s32.totalorder %s24, 1
      %p110 = por %p108, %p109
      %p112 = scmp.ne.s32.totalorder %s97, %s111
      %p113 = scmp.eq.s32.totalorder %s24, 0
      %p114 = por %p112, %p113
      %s115 = ssub.s32 %s18, %s25
      %p116 = scmp.eq.s32.totalorder %s115, 0
      %s118 = sadd.s32 %s117, 1
      %s119 = scalar_select %p116, %s117, %s118
      %p122 = pneg %p116
      %p123 = scmp.eq.s32.totalorder %s18, 1
      %p124 = por %p122, %p123
      %p125 = scmp.ne.s32.totalorder %s117, %s120
      %p126 = scmp.eq.s32.totalorder %s18, 0
      %p127 = por %p125, %p126
      %p128 = scmp.ne.s32.totalorder %s117, %s120
      %p129 = scmp.eq.s32.totalorder %s23, 1
      %p130 = por %p128, %p129
      %p131 = scmp.ne.s32.totalorder %s120, %s121
      %p132 = scmp.eq.s32.totalorder %s23, 0
      %p133 = por %p131, %p132
      %p134 = scmp.ne.s32.totalorder %s120, %s121
      %p135 = scmp.eq.s32.totalorder %s24, 1
      %p136 = por %p134, %p135
      %p138 = scmp.ne.s32.totalorder %s121, %s137
      %p139 = scmp.eq.s32.totalorder %s24, 0
      %p140 = por %p138, %p139
      %p141 = scmp.le.s32.totalorder 1, %s18
      %p142 = scmp.lt.s32.totalorder %s18, 3
      %p143 = pnand %p141, %p142
      %p144 = pneg %p143
      // Predicated region
      $region9: #{tpu_custom_call.1} parent=5 // pred_check
        _
      $region10: #{tpu_custom_call.1} parent=5 // pred_check_branch
        %146 = sbr.rel (%p143) target = $region12
      $region11: #{tpu_custom_call.1} parent=5 // pred_region
        %s147 = ssub.s32 %s18, 1
        // Predicated region
        $region13: #{tpu_custom_call.1} parent=11 // pred_check
          %p148 = pneg %p65
        $region14: #{tpu_custom_call.1} parent=11 // pred_check_branch
          %150 = sbr.rel (%p148) target = $region16
        $region15: #{tpu_custom_call.1} parent=11 // pred_region
          %152 = vsyncadd [#allocation7], 0
          %s154 = sshll.u32 %s1, 4
          %s155 = int_to_ptr.hbm [resolvable:$true] %s154
          %s156 = sshll.u32 [#allocation6], 4
          %s157 = int_to_ptr.vmem [resolvable:$true] %s156
          %159 = dma.hbm_to_vmem [thread:$0]  %s155, 128, %s157, [#allocation7]
        $region16: #{tpu_custom_call.1} parent=11 // pred_fallthru
          _
        // Predicated region
        $region17: #{tpu_custom_call.1} parent=11 // pred_check
          %p160 = pneg %p86
        $region18: #{tpu_custom_call.1} parent=11 // pred_check_branch
          %162 = sbr.rel (%p160) target = $region20
        $region19: #{tpu_custom_call.1} parent=11 // pred_region
          %164 = vsyncadd [#allocation7], 0
          %s166 = sshll.u32 %s2, 4
          %s167 = int_to_ptr.hbm [resolvable:$true] %s166
          %s168 = sshll.u32 [#allocation8], 4
          %s169 = int_to_ptr.vmem [resolvable:$true] %s168
          %171 = dma.hbm_to_vmem [thread:$0]  %s167, 128, %s169, [#allocation7]
        $region20: #{tpu_custom_call.1} parent=11 // pred_fallthru
          _
        // Predicated region
        $region21: #{tpu_custom_call.1} parent=11 // pred_check
          %p172 = pneg %p107
        $region22: #{tpu_custom_call.1} parent=11 // pred_check_branch
          %174 = sbr.rel (%p172) target = $region24
        $region23: #{tpu_custom_call.1} parent=11 // pred_region
          %176 = vsyncadd [#allocation10], 0
          %s177 = sshll.u32 %s3, 4
          %s178 = int_to_ptr.hbm [resolvable:$true] %s177
          %s179 = sshll.u32 [#allocation9], 4
          %s180 = int_to_ptr.vmem [resolvable:$true] %s179
          %185 = dma.hbm_to_vmem [thread:$0]  %s178, 8192, %s180, [#allocation10], 256, 256, 16
        $region24: #{tpu_custom_call.1} parent=11 // pred_fallthru
          _
      $region12: #{tpu_custom_call.1} parent=5 // pred_fallthru
        _
      %p186 = scmp.lt.s32.totalorder %s18, 2
      // Predicated region
      $region25: #{tpu_custom_call.1} parent=5 // pred_check
        %p187 = pneg %p186
      $region26: #{tpu_custom_call.1} parent=5 // pred_check_branch
        %189 = sbr.rel (%p187) target = $region28
      $region27: #{tpu_custom_call.1} parent=5 // pred_region
        // Predicated region
        $region29: #{tpu_custom_call.1} parent=27 // pred_check
          %p190 = pneg %p38
        $region30: #{tpu_custom_call.1} parent=27 // pred_check_branch
          %192 = sbr.rel (%p190) target = $region32
        $region31: #{tpu_custom_call.1} parent=27 // pred_region
          %s193 = sand.u32 %s28, 1
          %s194 = scalar_lea.sflag [#allocation4], %s193
          %s195 = sand.u32 %s28, 1
          %s196 = smul.addr %s195, 2
          %s197 = scalar_lea.vmem [#allocation3], %s196
          %s198 = smul.u32 2, %s18
          %200 = vsyncadd %s194, 0
          %s201 = scalar_lea.hbm %s0, %s198
          %s203 = sshll.u32 %s201, 4
          %s204 = int_to_ptr.hbm [resolvable:$true] %s203
          %s205 = sshll.u32 %s197, 4
          %s206 = int_to_ptr.vmem [resolvable:$true] %s205
          %208 = dma.hbm_to_vmem [thread:$0]  %s204, 32, %s206, %s194
        $region32: #{tpu_custom_call.1} parent=27 // pred_fallthru
          _
      $region28: #{tpu_custom_call.1} parent=5 // pred_fallthru
        _
      %p209 = scmp.le.s32.totalorder 1, %s18
      %p210 = scmp.lt.s32.totalorder %s18, 3
      %p211 = pnand %p209, %p210
      %p212 = pneg %p211
      // Predicated region
      $region33: #{tpu_custom_call.1} parent=5 // pred_check
        _
      $region34: #{tpu_custom_call.1} parent=5 // pred_check_branch
        %214 = sbr.rel (%p211) target = $region36
      $region35: #{tpu_custom_call.1} parent=5 // pred_region
        %s215 = ssub.s32 %s18, 1
        %s216 = sand.u32 %s31, 1
        %s217 = scalar_lea.sflag [#allocation4], %s216
        %s218 = sand.u32 %s31, 1
        %s219 = smul.addr %s218, 2
        %s220 = scalar_lea.vmem [#allocation3], %s219
        // Predicated region
        $region37: #{tpu_custom_call.1} parent=35 // pred_check
          %p221 = pneg %p44
        $region38: #{tpu_custom_call.1} parent=35 // pred_check_branch
          %223 = sbr.rel (%p221) target = $region40
        $region39: #{tpu_custom_call.1} parent=35 // pred_region
          %225 = dma.done %s217, 32
        $region40: #{tpu_custom_call.1} parent=35 // pred_fallthru
          _
        // Predicated region
        $region41: #{tpu_custom_call.1} parent=35 // pred_check
          %p226 = pneg %p65
        $region42: #{tpu_custom_call.1} parent=35 // pred_check_branch
          %228 = sbr.rel (%p226) target = $region44
        $region43: #{tpu_custom_call.1} parent=35 // pred_region
          %230 = dma.done [#allocation7], 128
        $region44: #{tpu_custom_call.1} parent=35 // pred_fallthru
          _
        // Predicated region
        $region45: #{tpu_custom_call.1} parent=35 // pred_check
          %p231 = pneg %p86
        $region46: #{tpu_custom_call.1} parent=35 // pred_check_branch
          %233 = sbr.rel (%p231) target = $region48
        $region47: #{tpu_custom_call.1} parent=35 // pred_region
          %235 = dma.done [#allocation7], 128
        $region48: #{tpu_custom_call.1} parent=35 // pred_fallthru
          _
        // Predicated region
        $region49: #{tpu_custom_call.1} parent=35 // pred_check
          %p236 = pneg %p107
        $region50: #{tpu_custom_call.1} parent=35 // pred_check_branch
          %238 = sbr.rel (%p236) target = $region52
        $region51: #{tpu_custom_call.1} parent=35 // pred_region
          %240 = dma.done [#allocation10], 8192
        $region52: #{tpu_custom_call.1} parent=35 // pred_fallthru
          _
        %s241 = sand.u32 %s31, 1
        %s242 = scalar_lea.sflag [#allocation4], %s241
        %s243 = sand.u32 %s31, 1
        %s244 = smul.addr %s243, 2
        %s245 = scalar_lea.vmem [#allocation3], %s244
        %p246 = pneg %p44
        %p247 = pneg %p41
        %p248 = pneg %p65
        %p249 = pneg %p62
        %p250 = pneg %p86
        %p251 = pneg %p83
        %p252 = pneg %p107
        %p253 = pneg %p104
        %p254 = pneg %p133
        %p255 = pneg %p130
        %s256 = sand.u32 %s120, 1
        %s257 = scalar_lea.sflag [#allocation5], %s256
        %s258 = sand.u32 %s120, 1
        %s259 = smul.addr %s258, 16
        %s260 = scalar_lea.vmem [#allocation11], %s259
        %s261 = smul.u32 2, %s23
        %s262 = smul.u32 2, %s23
        %v263 = vld [vmem:[%s220] sm:$0x3]
        %264 = vst [vmem:[%s260] sm:$0xff] 0.0
        %265 = vst [vmem:[%s260 + $0x8] sm:$0xff] 0.0
        %v266 = vld [vmem:[#allocation9] sm:$0xff]
        %v267 = vld [vmem:[#allocation9 + $0x8] sm:$0xff]
        %v268 = vld [vmem:[#allocation9 + $0x10] sm:$0xff]
        %v269 = vld [vmem:[#allocation9 + $0x18] sm:$0xff]
        %v270 = vld [vmem:[#allocation9 + $0x20] sm:$0xff]
        %v271 = vld [vmem:[#allocation9 + $0x28] sm:$0xff]
        %v272 = vld [vmem:[#allocation9 + $0x30] sm:$0xff]
        %v273 = vld [vmem:[#allocation9 + $0x38] sm:$0xff]
        %v274 = vld [vmem:[#allocation9 + $0x40] sm:$0xff]
        %v275 = vld [vmem:[#allocation9 + $0x48] sm:$0xff]
        %v276 = vld [vmem:[#allocation9 + $0x50] sm:$0xff]
        %v277 = vld [vmem:[#allocation9 + $0x58] sm:$0xff]
        %v278 = vld [vmem:[#allocation9 + $0x60] sm:$0xff]
        %v279 = vld [vmem:[#allocation9 + $0x68] sm:$0xff]
        %v280 = vld [vmem:[#allocation9 + $0x70] sm:$0xff]
        %v281 = vld [vmem:[#allocation9 + $0x78] sm:$0xff]
        %v282 = vld [vmem:[#allocation9 + $0x80] sm:$0xff]
        %v283 = vld [vmem:[#allocation9 + $0x88] sm:$0xff]
        %v284 = vld [vmem:[#allocation9 + $0x90] sm:$0xff]
        %v285 = vld [vmem:[#allocation9 + $0x98] sm:$0xff]
        %v286 = vld [vmem:[#allocation9 + $0xa0] sm:$0xff]
        %v287 = vld [vmem:[#allocation9 + $0xa8] sm:$0xff]
        %v288 = vld [vmem:[#allocation9 + $0xb0] sm:$0xff]
        %v289 = vld [vmem:[#allocation9 + $0xb8] sm:$0xff]
        %v290 = vld [vmem:[#allocation9 + $0xc0] sm:$0xff]
        %v291 = vld [vmem:[#allocation9 + $0xc8] sm:$0xff]
        %v292 = vld [vmem:[#allocation9 + $0xd0] sm:$0xff]
        %v293 = vld [vmem:[#allocation9 + $0xd8] sm:$0xff]
        %v294 = vld [vmem:[#allocation9 + $0xe0] sm:$0xff]
        %v295 = vld [vmem:[#allocation9 + $0xe8] sm:$0xff]
        %v296 = vld [vmem:[#allocation9 + $0xf0] sm:$0xff]
        %v297 = vld [vmem:[#allocation9 + $0xf8] sm:$0xff]
        %v298 = vld [vmem:[#allocation9 + $0x100] sm:$0xff]
        %v299 = vld [vmem:[#allocation9 + $0x108] sm:$0xff]
        %v300 = vld [vmem:[#allocation9 + $0x110] sm:$0xff]
        %v301 = vld [vmem:[#allocation9 + $0x118] sm:$0xff]
        %v302 = vld [vmem:[#allocation9 + $0x120] sm:$0xff]
        %v303 = vld [vmem:[#allocation9 + $0x128] sm:$0xff]
        %v304 = vld [vmem:[#allocation9 + $0x130] sm:$0xff]
        %v305 = vld [vmem:[#allocation9 + $0x138] sm:$0xff]
        %v306 = vld [vmem:[#allocation9 + $0x140] sm:$0xff]
        %v307 = vld [vmem:[#allocation9 + $0x148] sm:$0xff]
        %v308 = vld [vmem:[#allocation9 + $0x150] sm:$0xff]
        %v309 = vld [vmem:[#allocation9 + $0x158] sm:$0xff]
        %v310 = vld [vmem:[#allocation9 + $0x160] sm:$0xff]
        %v311 = vld [vmem:[#allocation9 + $0x168] sm:$0xff]
        %v312 = vld [vmem:[#allocation9 + $0x170] sm:$0xff]
        %v313 = vld [vmem:[#allocation9 + $0x178] sm:$0xff]
        %v314 = vld [vmem:[#allocation9 + $0x180] sm:$0xff]
        %v315 = vld [vmem:[#allocation9 + $0x188] sm:$0xff]
        %v316 = vld [vmem:[#allocation9 + $0x190] sm:$0xff]
        %v317 = vld [vmem:[#allocation9 + $0x198] sm:$0xff]
        %v318 = vld [vmem:[#allocation9 + $0x1a0] sm:$0xff]
        %v319 = vld [vmem:[#allocation9 + $0x1a8] sm:$0xff]
        %v320 = vld [vmem:[#allocation9 + $0x1b0] sm:$0xff]
        %v321 = vld [vmem:[#allocation9 + $0x1b8] sm:$0xff]
        %v322 = vld [vmem:[#allocation9 + $0x1c0] sm:$0xff]
        %v323 = vld [vmem:[#allocation9 + $0x1c8] sm:$0xff]
        %v324 = vld [vmem:[#allocation9 + $0x1d0] sm:$0xff]
        %v325 = vld [vmem:[#allocation9 + $0x1d8] sm:$0xff]
        %v326 = vld [vmem:[#allocation9 + $0x1e0] sm:$0xff]
        %v327 = vld [vmem:[#allocation9 + $0x1e8] sm:$0xff]
        %v328 = vld [vmem:[#allocation9 + $0x1f0] sm:$0xff]
        %v329 = vld [vmem:[#allocation9 + $0x1f8] sm:$0xff]
        %v330 = vperm.slane %v263, 0
        %v331 = vperm.slane %v263, 1
        %vm332 = vcmp.eq.s32.totalorder %v266, %v330
        %vm333 = vcmp.eq.s32.totalorder %v267, %v331
        %vm334 = vcmp.eq.s32.totalorder %v268, %v330
        %vm335 = vcmp.eq.s32.totalorder %v269, %v331
        %vm336 = vcmp.eq.s32.totalorder %v270, %v330
        %vm337 = vcmp.eq.s32.totalorder %v271, %v331
        %vm338 = vcmp.eq.s32.totalorder %v272, %v330
        %vm339 = vcmp.eq.s32.totalorder %v273, %v331
        %vm340 = vcmp.eq.s32.totalorder %v274, %v330
        %vm341 = vcmp.eq.s32.totalorder %v275, %v331
        %vm342 = vcmp.eq.s32.totalorder %v276, %v330
        %vm343 = vcmp.eq.s32.totalorder %v277, %v331
        %vm344 = vcmp.eq.s32.totalorder %v278, %v330
        %vm345 = vcmp.eq.s32.totalorder %v279, %v331
        %vm346 = vcmp.eq.s32.totalorder %v280, %v330
        %vm347 = vcmp.eq.s32.totalorder %v281, %v331
        %vm348 = vcmp.eq.s32.totalorder %v282, %v330
        %vm349 = vcmp.eq.s32.totalorder %v283, %v331
        %vm350 = vcmp.eq.s32.totalorder %v284, %v330
        %vm351 = vcmp.eq.s32.totalorder %v285, %v331
        %vm352 = vcmp.eq.s32.totalorder %v286, %v330
        %vm353 = vcmp.eq.s32.totalorder %v287, %v331
        %vm354 = vcmp.eq.s32.totalorder %v288, %v330
        %vm355 = vcmp.eq.s32.totalorder %v289, %v331
        %vm356 = vcmp.eq.s32.totalorder %v290, %v330
        %vm357 = vcmp.eq.s32.totalorder %v291, %v331
        %vm358 = vcmp.eq.s32.totalorder %v292, %v330
        %vm359 = vcmp.eq.s32.totalorder %v293, %v331
        %vm360 = vcmp.eq.s32.totalorder %v294, %v330
        %vm361 = vcmp.eq.s32.totalorder %v295, %v331
        %vm362 = vcmp.eq.s32.totalorder %v296, %v330
        %vm363 = vcmp.eq.s32.totalorder %v297, %v331
        %vm364 = vcmp.eq.s32.totalorder %v298, %v330
        %vm365 = vcmp.eq.s32.totalorder %v299, %v331
        %vm366 = vcmp.eq.s32.totalorder %v300, %v330
        %vm367 = vcmp.eq.s32.totalorder %v301, %v331
        %vm368 = vcmp.eq.s32.totalorder %v302, %v330
        %vm369 = vcmp.eq.s32.totalorder %v303, %v331
        %vm370 = vcmp.eq.s32.totalorder %v304, %v330
        %vm371 = vcmp.eq.s32.totalorder %v305, %v331
        %vm372 = vcmp.eq.s32.totalorder %v306, %v330
        %vm373 = vcmp.eq.s32.totalorder %v307, %v331
        %vm374 = vcmp.eq.s32.totalorder %v308, %v330
        %vm375 = vcmp.eq.s32.totalorder %v309, %v331
        %vm376 = vcmp.eq.s32.totalorder %v310, %v330
        %vm377 = vcmp.eq.s32.totalorder %v311, %v331
        %vm378 = vcmp.eq.s32.totalorder %v312, %v330
        %vm379 = vcmp.eq.s32.totalorder %v313, %v331
        %vm380 = vcmp.eq.s32.totalorder %v314, %v330
        %vm381 = vcmp.eq.s32.totalorder %v315, %v331
        %vm382 = vcmp.eq.s32.totalorder %v316, %v330
        %vm383 = vcmp.eq.s32.totalorder %v317, %v331
        %vm384 = vcmp.eq.s32.totalorder %v318, %v330
        %vm385 = vcmp.eq.s32.totalorder %v319, %v331
        %vm386 = vcmp.eq.s32.totalorder %v320, %v330
        %vm387 = vcmp.eq.s32.totalorder %v321, %v331
        %vm388 = vcmp.eq.s32.totalorder %v322, %v330
        %vm389 = vcmp.eq.s32.totalorder %v323, %v331
        %vm390 = vcmp.eq.s32.totalorder %v324, %v330
        %vm391 = vcmp.eq.s32.totalorder %v325, %v331
        %vm392 = vcmp.eq.s32.totalorder %v326, %v330
        %vm393 = vcmp.eq.s32.totalorder %v327, %v331
        %vm394 = vcmp.eq.s32.totalorder %v328, %v330
        %vm395 = vcmp.eq.s32.totalorder %v329, %v331
        %v396 = vsel %vm332, 1, 0
        %v397 = vsel %vm333, 1, 0
        %v398 = vsel %vm334, 1, 0
        %v399 = vsel %vm335, 1, 0
        %v400 = vsel %vm336, 1, 0
        %v401 = vsel %vm337, 1, 0
        %v402 = vsel %vm338, 1, 0
        %v403 = vsel %vm339, 1, 0
        %v404 = vsel %vm340, 1, 0
        %v405 = vsel %vm341, 1, 0
        %v406 = vsel %vm342, 1, 0
        %v407 = vsel %vm343, 1, 0
        %v408 = vsel %vm344, 1, 0
        %v409 = vsel %vm345, 1, 0
        %v410 = vsel %vm346, 1, 0
        %v411 = vsel %vm347, 1, 0
        %v412 = vsel %vm348, 1, 0
        %v413 = vsel %vm349, 1, 0
        %v414 = vsel %vm350, 1, 0
        %v415 = vsel %vm351, 1, 0
        %v416 = vsel %vm352, 1, 0
        %v417 = vsel %vm353, 1, 0
        %v418 = vsel %vm354, 1, 0
        %v419 = vsel %vm355, 1, 0
        %v420 = vsel %vm356, 1, 0
        %v421 = vsel %vm357, 1, 0
        %v422 = vsel %vm358, 1, 0
        %v423 = vsel %vm359, 1, 0
        %v424 = vsel %vm360, 1, 0
        %v425 = vsel %vm361, 1, 0
        %v426 = vsel %vm362, 1, 0
        %v427 = vsel %vm363, 1, 0
        %v428 = vsel %vm364, 1, 0
        %v429 = vsel %vm365, 1, 0
        %v430 = vsel %vm366, 1, 0
        %v431 = vsel %vm367, 1, 0
        %v432 = vsel %vm368, 1, 0
        %v433 = vsel %vm369, 1, 0
        %v434 = vsel %vm370, 1, 0
        %v435 = vsel %vm371, 1, 0
        %v436 = vsel %vm372, 1, 0
        %v437 = vsel %vm373, 1, 0
        %v438 = vsel %vm374, 1, 0
        %v439 = vsel %vm375, 1, 0
        %v440 = vsel %vm376, 1, 0
        %v441 = vsel %vm377, 1, 0
        %v442 = vsel %vm378, 1, 0
        %v443 = vsel %vm379, 1, 0
        %v444 = vsel %vm380, 1, 0
        %v445 = vsel %vm381, 1, 0
        %v446 = vsel %vm382, 1, 0
        %v447 = vsel %vm383, 1, 0
        %v448 = vsel %vm384, 1, 0
        %v449 = vsel %vm385, 1, 0
        %v450 = vsel %vm386, 1, 0
        %v451 = vsel %vm387, 1, 0
        %v452 = vsel %vm388, 1, 0
        %v453 = vsel %vm389, 1, 0
        %v454 = vsel %vm390, 1, 0
        %v455 = vsel %vm391, 1, 0
        %v456 = vsel %vm392, 1, 0
        %v457 = vsel %vm393, 1, 0
        %v458 = vsel %vm394, 1, 0
        %v459 = vsel %vm395, 1, 0
        %v460 = vcvt.s32.f32 %v396
        %v461 = vcvt.s32.f32 %v397
        %v462 = vcvt.s32.f32 %v398
        %v463 = vcvt.s32.f32 %v399
        %v464 = vcvt.s32.f32 %v400
        %v465 = vcvt.s32.f32 %v401
        %v466 = vcvt.s32.f32 %v402
        %v467 = vcvt.s32.f32 %v403
        %v468 = vcvt.s32.f32 %v404
        %v469 = vcvt.s32.f32 %v405
        %v470 = vcvt.s32.f32 %v406
        %v471 = vcvt.s32.f32 %v407
        %v472 = vcvt.s32.f32 %v408
        %v473 = vcvt.s32.f32 %v409
        %v474 = vcvt.s32.f32 %v410
        %v475 = vcvt.s32.f32 %v411
        %v476 = vcvt.s32.f32 %v412
        %v477 = vcvt.s32.f32 %v413
        %v478 = vcvt.s32.f32 %v414
        %v479 = vcvt.s32.f32 %v415
        %v480 = vcvt.s32.f32 %v416
        %v481 = vcvt.s32.f32 %v417
        %v482 = vcvt.s32.f32 %v418
        %v483 = vcvt.s32.f32 %v419
        %v484 = vcvt.s32.f32 %v420
        %v485 = vcvt.s32.f32 %v421
        %v486 = vcvt.s32.f32 %v422
        %v487 = vcvt.s32.f32 %v423
        %v488 = vcvt.s32.f32 %v424
        %v489 = vcvt.s32.f32 %v425
        %v490 = vcvt.s32.f32 %v426
        %v491 = vcvt.s32.f32 %v427
        %v492 = vcvt.s32.f32 %v428
        %v493 = vcvt.s32.f32 %v429
        %v494 = vcvt.s32.f32 %v430
        %v495 = vcvt.s32.f32 %v431
        %v496 = vcvt.s32.f32 %v432
        %v497 = vcvt.s32.f32 %v433
        %v498 = vcvt.s32.f32 %v434
        %v499 = vcvt.s32.f32 %v435
        %v500 = vcvt.s32.f32 %v436
        %v501 = vcvt.s32.f32 %v437
        %v502 = vcvt.s32.f32 %v438
        %v503 = vcvt.s32.f32 %v439
        %v504 = vcvt.s32.f32 %v440
        %v505 = vcvt.s32.f32 %v441
        %v506 = vcvt.s32.f32 %v442
        %v507 = vcvt.s32.f32 %v443
        %v508 = vcvt.s32.f32 %v444
        %v509 = vcvt.s32.f32 %v445
        %v510 = vcvt.s32.f32 %v446
        %v511 = vcvt.s32.f32 %v447
        %v512 = vcvt.s32.f32 %v448
        %v513 = vcvt.s32.f32 %v449
        %v514 = vcvt.s32.f32 %v450
        %v515 = vcvt.s32.f32 %v451
        %v516 = vcvt.s32.f32 %v452
        %v517 = vcvt.s32.f32 %v453
        %v518 = vcvt.s32.f32 %v454
        %v519 = vcvt.s32.f32 %v455
        %v520 = vcvt.s32.f32 %v456
        %v521 = vcvt.s32.f32 %v457
        %v522 = vcvt.s32.f32 %v458
        %v523 = vcvt.s32.f32 %v459
        %v524 = vpack.c.bf16 %v461, %v460
        %v525 = vpack.c.bf16 %v463, %v462
        %v526 = vpack.c.bf16 %v465, %v464
        %v527 = vpack.c.bf16 %v467, %v466
        %v528 = vpack.c.bf16 %v469, %v468
        %v529 = vpack.c.bf16 %v471, %v470
        %v530 = vpack.c.bf16 %v473, %v472
        %v531 = vpack.c.bf16 %v475, %v474
        %v532 = vpack.c.bf16 %v477, %v476
        %v533 = vpack.c.bf16 %v479, %v478
        %v534 = vpack.c.bf16 %v481, %v480
        %v535 = vpack.c.bf16 %v483, %v482
        %v536 = vpack.c.bf16 %v485, %v484
        %v537 = vpack.c.bf16 %v487, %v486
        %v538 = vpack.c.bf16 %v489, %v488
        %v539 = vpack.c.bf16 %v491, %v490
        %v540 = vpack.c.bf16 %v493, %v492
        %v541 = vpack.c.bf16 %v495, %v494
        %v542 = vpack.c.bf16 %v497, %v496
        %v543 = vpack.c.bf16 %v499, %v498
        %v544 = vpack.c.bf16 %v501, %v500
        %v545 = vpack.c.bf16 %v503, %v502
        %v546 = vpack.c.bf16 %v505, %v504
        %v547 = vpack.c.bf16 %v507, %v506
        %v548 = vpack.c.bf16 %v509, %v508
        %v549 = vpack.c.bf16 %v511, %v510
        %v550 = vpack.c.bf16 %v513, %v512
        %v551 = vpack.c.bf16 %v515, %v514
        %v552 = vpack.c.bf16 %v517, %v516
        %v553 = vpack.c.bf16 %v519, %v518
        %v554 = vpack.c.bf16 %v521, %v520
        %v555 = vpack.c.bf16 %v523, %v522
        %556 = vst [vmem:[#allocation2] sm:$0xff] %v524
        %557 = vst [vmem:[#allocation2 + $0x8] sm:$0xff] %v525
        %558 = vst [vmem:[#allocation2 + $0x10] sm:$0xff] %v526
        %559 = vst [vmem:[#allocation2 + $0x18] sm:$0xff] %v527
        %560 = vst [vmem:[#allocation2 + $0x20] sm:$0xff] %v528
        %561 = vst [vmem:[#allocation2 + $0x28] sm:$0xff] %v529
        %562 = vst [vmem:[#allocation2 + $0x30] sm:$0xff] %v530
        %563 = vst [vmem:[#allocation2 + $0x38] sm:$0xff] %v531
        %564 = vst [vmem:[#allocation2 + $0x40] sm:$0xff] %v532
        %565 = vst [vmem:[#allocation2 + $0x48] sm:$0xff] %v533
        %566 = vst [vmem:[#allocation2 + $0x50] sm:$0xff] %v534
        %567 = vst [vmem:[#allocation2 + $0x58] sm:$0xff] %v535
        %568 = vst [vmem:[#allocation2 + $0x60] sm:$0xff] %v536
        %569 = vst [vmem:[#allocation2 + $0x68] sm:$0xff] %v537
        %570 = vst [vmem:[#allocation2 + $0x70] sm:$0xff] %v538
        %571 = vst [vmem:[#allocation2 + $0x78] sm:$0xff] %v539
        %572 = vst [vmem:[#allocation2 + $0x80] sm:$0xff] %v540
        %573 = vst [vmem:[#allocation2 + $0x88] sm:$0xff] %v541
        %574 = vst [vmem:[#allocation2 + $0x90] sm:$0xff] %v542
        %575 = vst [vmem:[#allocation2 + $0x98] sm:$0xff] %v543
        %576 = vst [vmem:[#allocation2 + $0xa0] sm:$0xff] %v544
        %577 = vst [vmem:[#allocation2 + $0xa8] sm:$0xff] %v545
        %578 = vst [vmem:[#allocation2 + $0xb0] sm:$0xff] %v546
        %579 = vst [vmem:[#allocation2 + $0xb8] sm:$0xff] %v547
        %580 = vst [vmem:[#allocation2 + $0xc0] sm:$0xff] %v548
        %581 = vst [vmem:[#allocation2 + $0xc8] sm:$0xff] %v549
        %582 = vst [vmem:[#allocation2 + $0xd0] sm:$0xff] %v550
        %583 = vst [vmem:[#allocation2 + $0xd8] sm:$0xff] %v551
        %584 = vst [vmem:[#allocation2 + $0xe0] sm:$0xff] %v552
        %585 = vst [vmem:[#allocation2 + $0xe8] sm:$0xff] %v553
        %586 = vst [vmem:[#allocation2 + $0xf0] sm:$0xff] %v554
        %587 = vst [vmem:[#allocation2 + $0xf8] sm:$0xff] %v555
        %v588 = vld [vmem:[#allocation2] sm:$0xff]
        %v589 = vld [vmem:[#allocation2 + $0x8] sm:$0xff]
        %v590 = vld [vmem:[#allocation2 + $0x10] sm:$0xff]
        %v591 = vld [vmem:[#allocation2 + $0x18] sm:$0xff]
        %v592 = vld [vmem:[#allocation2 + $0x20] sm:$0xff]
        %v593 = vld [vmem:[#allocation2 + $0x28] sm:$0xff]
        %v594 = vld [vmem:[#allocation2 + $0x30] sm:$0xff]
        %v595 = vld [vmem:[#allocation2 + $0x38] sm:$0xff]
        %v596 = vld [vmem:[#allocation2 + $0x40] sm:$0xff]
        %v597 = vld [vmem:[#allocation2 + $0x48] sm:$0xff]
        %v598 = vld [vmem:[#allocation2 + $0x50] sm:$0xff]
        %v599 = vld [vmem:[#allocation2 + $0x58] sm:$0xff]
        %v600 = vld [vmem:[#allocation2 + $0x60] sm:$0xff]
        %v601 = vld [vmem:[#allocation2 + $0x68] sm:$0xff]
        %v602 = vld [vmem:[#allocation2 + $0x70] sm:$0xff]
        %v603 = vld [vmem:[#allocation2 + $0x78] sm:$0xff]
        %v604 = vld [vmem:[#allocation2 + $0x80] sm:$0xff]
        %v605 = vld [vmem:[#allocation2 + $0x88] sm:$0xff]
        %v606 = vld [vmem:[#allocation2 + $0x90] sm:$0xff]
        %v607 = vld [vmem:[#allocation2 + $0x98] sm:$0xff]
        %v608 = vld [vmem:[#allocation2 + $0xa0] sm:$0xff]
        %v609 = vld [vmem:[#allocation2 + $0xa8] sm:$0xff]
        %v610 = vld [vmem:[#allocation2 + $0xb0] sm:$0xff]
        %v611 = vld [vmem:[#allocation2 + $0xb8] sm:$0xff]
        %v612 = vld [vmem:[#allocation2 + $0xc0] sm:$0xff]
        %v613 = vld [vmem:[#allocation2 + $0xc8] sm:$0xff]
        %v614 = vld [vmem:[#allocation2 + $0xd0] sm:$0xff]
        %v615 = vld [vmem:[#allocation2 + $0xd8] sm:$0xff]
        %v616 = vld [vmem:[#allocation2 + $0xe0] sm:$0xff]
        %v617 = vld [vmem:[#allocation2 + $0xe8] sm:$0xff]
        %v618 = vld [vmem:[#allocation2 + $0xf0] sm:$0xff]
        %v619 = vld [vmem:[#allocation2 + $0xf8] sm:$0xff]
        %v620 = vld [vmem:[%s260] sm:$0xff]
        %v621 = vld [vmem:[%s260 + $0x8] sm:$0xff]
        %v622 = vld [vmem:[#allocation6] sm:$0xff]
        %v624 = vunpack.c.l.b16 %v622
        %v625 = vunpack.c.h.b16 %v622
        %v626 = vpack.c.b16 %v624, %v624
        %v627 = vpack.c.b16 %v625, %v625
        %v662 = vunpack.c.l.b16 %v588
        %v663 = vunpack.c.h.b16 %v588
        %v664 = vunpack.c.l.b16 %v589
        %v665 = vunpack.c.h.b16 %v589
        %v666 = vunpack.c.l.b16 %v590
        %v667 = vunpack.c.h.b16 %v590
        %v668 = vunpack.c.l.b16 %v591
        %v669 = vunpack.c.h.b16 %v591
        %v670 = vunpack.c.l.b16 %v592
        %v671 = vunpack.c.h.b16 %v592
        %v672 = vunpack.c.l.b16 %v593
        %v673 = vunpack.c.h.b16 %v593
        %v674 = vunpack.c.l.b16 %v594
        %v675 = vunpack.c.h.b16 %v594
        %v676 = vunpack.c.l.b16 %v595
        %v677 = vunpack.c.h.b16 %v595
        %v678 = vunpack.c.l.b16 %v596
        %v679 = vunpack.c.h.b16 %v596
        %v680 = vunpack.c.l.b16 %v597
        %v681 = vunpack.c.h.b16 %v597
        %v682 = vunpack.c.l.b16 %v598
        %v683 = vunpack.c.h.b16 %v598
        %v684 = vunpack.c.l.b16 %v599
        %v685 = vunpack.c.h.b16 %v599
        %v686 = vunpack.c.l.b16 %v600
        %v687 = vunpack.c.h.b16 %v600
        %v688 = vunpack.c.l.b16 %v601
        %v689 = vunpack.c.h.b16 %v601
        %v690 = vunpack.c.l.b16 %v602
        %v691 = vunpack.c.h.b16 %v602
        %v692 = vunpack.c.l.b16 %v603
        %v693 = vunpack.c.h.b16 %v603
        %v694 = vunpack.c.l.b16 %v604
        %v695 = vunpack.c.h.b16 %v604
        %v696 = vunpack.c.l.b16 %v605
        %v697 = vunpack.c.h.b16 %v605
        %v698 = vunpack.c.l.b16 %v606
        %v699 = vunpack.c.h.b16 %v606
        %v700 = vunpack.c.l.b16 %v607
        %v701 = vunpack.c.h.b16 %v607
        %v702 = vunpack.c.l.b16 %v608
        %v703 = vunpack.c.h.b16 %v608
        %v704 = vunpack.c.l.b16 %v609
        %v705 = vunpack.c.h.b16 %v609
        %v706 = vunpack.c.l.b16 %v610
        %v707 = vunpack.c.h.b16 %v610
        %v708 = vunpack.c.l.b16 %v611
        %v709 = vunpack.c.h.b16 %v611
        %v710 = vunpack.c.l.b16 %v612
        %v711 = vunpack.c.h.b16 %v612
        %v712 = vunpack.c.l.b16 %v613
        %v713 = vunpack.c.h.b16 %v613
        %v714 = vunpack.c.l.b16 %v614
        %v715 = vunpack.c.h.b16 %v614
        %v716 = vunpack.c.l.b16 %v615
        %v717 = vunpack.c.h.b16 %v615
        %v718 = vunpack.c.l.b16 %v616
        %v719 = vunpack.c.h.b16 %v616
        %v720 = vunpack.c.l.b16 %v617
        %v721 = vunpack.c.h.b16 %v617
        %v722 = vunpack.c.l.b16 %v618
        %v723 = vunpack.c.h.b16 %v618
        %v724 = vunpack.c.l.b16 %v619
        %v725 = vunpack.c.h.b16 %v619
        %v726 = vpack.c.b16 %v664, %v662
        %v727 = vpack.c.b16 %v665, %v663
        %v728 = vpack.c.b16 %v668, %v666
        %v729 = vpack.c.b16 %v669, %v667
        %v730 = vpack.c.b16 %v672, %v670
        %v731 = vpack.c.b16 %v673, %v671
        %v732 = vpack.c.b16 %v676, %v674
        %v733 = vpack.c.b16 %v677, %v675
        %v734 = vpack.c.b16 %v680, %v678
        %v735 = vpack.c.b16 %v681, %v679
        %v736 = vpack.c.b16 %v684, %v682
        %v737 = vpack.c.b16 %v685, %v683
        %v738 = vpack.c.b16 %v688, %v686
        %v739 = vpack.c.b16 %v689, %v687
        %v740 = vpack.c.b16 %v692, %v690
        %v741 = vpack.c.b16 %v693, %v691
        %v742 = vpack.c.b16 %v696, %v694
        %v743 = vpack.c.b16 %v697, %v695
        %v744 = vpack.c.b16 %v700, %v698
        %v745 = vpack.c.b16 %v701, %v699
        %v746 = vpack.c.b16 %v704, %v702
        %v747 = vpack.c.b16 %v705, %v703
        %v748 = vpack.c.b16 %v708, %v706
        %v749 = vpack.c.b16 %v709, %v707
        %v750 = vpack.c.b16 %v712, %v710
        %v751 = vpack.c.b16 %v713, %v711
        %v752 = vpack.c.b16 %v716, %v714
        %v753 = vpack.c.b16 %v717, %v715
        %v754 = vpack.c.b16 %v720, %v718
        %v755 = vpack.c.b16 %v721, %v719
        %v756 = vpack.c.b16 %v724, %v722
        %v757 = vpack.c.b16 %v725, %v723
        %790 = vmatpush.bf16.msra.mxu0 %v740
        %791 = vmatpush.bf16.msra.mxu0 %v738
        %792 = vmatpush.bf16.msra.mxu0 %v736
        %793 = vmatpush.bf16.msra.mxu0 %v734
        %794 = vmatpush.bf16.msra.mxu0 %v732
        %795 = vmatpush.bf16.msra.mxu0 %v730
        %796 = vmatpush.bf16.msra.mxu0 %v728
        %797 = vmatpush.bf16.msra.mxu0 %v726
        %798 = vmatmul.bf16.gmra.mxu0 %v626
        %v799 = vpop.f32.mrf.mxu0
        %v800 = vadd.f32 0.0, %v799
        %v801 = vpop.f32.mrf.mxu0
        %802 = vdwg.mxu0
        %803 = vmatpush.bf16.msra.mxu0 %v756
        %804 = vmatpush.bf16.msra.mxu0 %v754
        %805 = vmatpush.bf16.msra.mxu0 %v752
        %806 = vmatpush.bf16.msra.mxu0 %v750
        %807 = vmatpush.bf16.msra.mxu0 %v748
        %808 = vmatpush.bf16.msra.mxu0 %v746
        %809 = vmatpush.bf16.msra.mxu0 %v744
        %810 = vmatpush.bf16.msra.mxu0 %v742
        %811 = vmatmul.bf16.gmra.mxu0 %v627
        %v812 = vpop.f32.mrf.mxu0
        %v813 = vadd.f32 %v800, %v812
        %v814 = vpop.f32.mrf.mxu0
        %815 = vdwg.mxu0
        %816 = vmatpush.bf16.msra.mxu0 %v741
        %817 = vmatpush.bf16.msra.mxu0 %v739
        %818 = vmatpush.bf16.msra.mxu0 %v737
        %819 = vmatpush.bf16.msra.mxu0 %v735
        %820 = vmatpush.bf16.msra.mxu0 %v733
        %821 = vmatpush.bf16.msra.mxu0 %v731
        %822 = vmatpush.bf16.msra.mxu0 %v729
        %823 = vmatpush.bf16.msra.mxu0 %v727
        %824 = vmatmul.bf16.gmra.mxu0 %v626
        %v825 = vpop.f32.mrf.mxu0
        %v826 = vadd.f32 0.0, %v825
        %v827 = vpop.f32.mrf.mxu0
        %828 = vdwg.mxu0
        %829 = vmatpush.bf16.msra.mxu0 %v757
        %830 = vmatpush.bf16.msra.mxu0 %v755
        %831 = vmatpush.bf16.msra.mxu0 %v753
        %832 = vmatpush.bf16.msra.mxu0 %v751
        %833 = vmatpush.bf16.msra.mxu0 %v749
        %834 = vmatpush.bf16.msra.mxu0 %v747
        %835 = vmatpush.bf16.msra.mxu0 %v745
        %836 = vmatpush.bf16.msra.mxu0 %v743
        %837 = vmatmul.bf16.gmra.mxu0 %v627
        %v838 = vpop.f32.mrf.mxu0
        %v839 = vadd.f32 %v826, %v838
        %v840 = vpop.f32.mrf.mxu0
        %841 = vdwg.mxu0
        %v842 = vadd.f32 %v620, %v813
        %v843 = vadd.f32 %v621, %v839
        %844 = vst [vmem:[%s260] sm:$0xff] %v842
        %845 = vst [vmem:[%s260 + $0x8] sm:$0xff] %v843
        %v846 = vld [vmem:[%s260] sm:$0xff]
        %v847 = vld [vmem:[%s260 + $0x8] sm:$0xff]
        %v848 = vld [vmem:[#allocation8] sm:$0xff]
        %v850 = vunpack.c.l.b16 %v848
        %v851 = vunpack.c.h.b16 %v848
        %v852 = vpack.c.b16 %v850, %v850
        %v853 = vpack.c.b16 %v851, %v851
        %856 = vmatpush.bf16.msra.mxu0 %v740
        %857 = vmatpush.bf16.msra.mxu0 %v738
        %858 = vmatpush.bf16.msra.mxu0 %v736
        %859 = vmatpush.bf16.msra.mxu0 %v734
        %860 = vmatpush.bf16.msra.mxu0 %v732
        %861 = vmatpush.bf16.msra.mxu0 %v730
        %862 = vmatpush.bf16.msra.mxu0 %v728
        %863 = vmatpush.bf16.msra.mxu0 %v726
        %864 = vmatmul.bf16.gmra.mxu0 %v852
        %v865 = vpop.f32.mrf.mxu0
        %v866 = vadd.f32 0.0, %v865
        %v867 = vpop.f32.mrf.mxu0
        %868 = vdwg.mxu0
        %869 = vmatpush.bf16.msra.mxu0 %v756
        %870 = vmatpush.bf16.msra.mxu0 %v754
        %871 = vmatpush.bf16.msra.mxu0 %v752
        %872 = vmatpush.bf16.msra.mxu0 %v750
        %873 = vmatpush.bf16.msra.mxu0 %v748
        %874 = vmatpush.bf16.msra.mxu0 %v746
        %875 = vmatpush.bf16.msra.mxu0 %v744
        %876 = vmatpush.bf16.msra.mxu0 %v742
        %877 = vmatmul.bf16.gmra.mxu0 %v853
        %v878 = vpop.f32.mrf.mxu0
        %v879 = vadd.f32 %v866, %v878
        %v880 = vpop.f32.mrf.mxu0
        %881 = vdwg.mxu0
        %882 = vmatpush.bf16.msra.mxu0 %v741
        %883 = vmatpush.bf16.msra.mxu0 %v739
        %884 = vmatpush.bf16.msra.mxu0 %v737
        %885 = vmatpush.bf16.msra.mxu0 %v735
        %886 = vmatpush.bf16.msra.mxu0 %v733
        %887 = vmatpush.bf16.msra.mxu0 %v731
        %888 = vmatpush.bf16.msra.mxu0 %v729
        %889 = vmatpush.bf16.msra.mxu0 %v727
        %890 = vmatmul.bf16.gmra.mxu0 %v852
        %v891 = vpop.f32.mrf.mxu0
        %v892 = vadd.f32 0.0, %v891
        %v893 = vpop.f32.mrf.mxu0
        %894 = vdwg.mxu0
        %895 = vmatpush.bf16.msra.mxu0 %v757
        %896 = vmatpush.bf16.msra.mxu0 %v755
        %897 = vmatpush.bf16.msra.mxu0 %v753
        %898 = vmatpush.bf16.msra.mxu0 %v751
        %899 = vmatpush.bf16.msra.mxu0 %v749
        %900 = vmatpush.bf16.msra.mxu0 %v747
        %901 = vmatpush.bf16.msra.mxu0 %v745
        %902 = vmatpush.bf16.msra.mxu0 %v743
        %903 = vmatmul.bf16.gmra.mxu0 %v853
        %v904 = vpop.f32.mrf.mxu0
        %v905 = vadd.f32 %v892, %v904
        %v906 = vpop.f32.mrf.mxu0
        %907 = vdwg.mxu0
        %v908 = vadd.f32 %v846, %v879
        %v909 = vadd.f32 %v847, %v905
        %910 = vst [vmem:[%s260] sm:$0xff] %v908
        %911 = vst [vmem:[%s260 + $0x8] sm:$0xff] %v909
        %s912 = sand.u32 %s120, 1
        %s913 = scalar_lea.sflag [#allocation5], %s912
        %s914 = sand.u32 %s120, 1
        %s915 = smul.addr %s914, 16
        %s916 = scalar_lea.vmem [#allocation11], %s915
        // Predicated region
        $region53: #{tpu_custom_call.1} parent=35 // pred_check
          %p917 = pneg %p130
        $region54: #{tpu_custom_call.1} parent=35 // pred_check_branch
          %919 = sbr.rel (%p917) target = $region56
        $region55: #{tpu_custom_call.1} parent=35 // pred_region
          %s920 = smul.u32 2, %s23
          %922 = vsyncadd %s913, 0
          %s923 = smul.addr %s920, 8
          %s924 = scalar_lea.hbm %s4, %s923
          %s926 = sshll.u32 %s916, 4
          %s927 = int_to_ptr.vmem [resolvable:$true] %s926
          %s928 = sshll.u32 %s924, 4
          %s929 = int_to_ptr.hbm [resolvable:$true] %s928
          %931 = dma.vmem_to_hbm [thread:$0]  %s927, 256, %s929, %s913
        $region56: #{tpu_custom_call.1} parent=35 // pred_fallthru
          _
      $region36: #{tpu_custom_call.1} parent=5 // pred_fallthru
        _
      %p932 = scmp.le.s32.totalorder 2, %s18
      // Predicated region
      $region57: #{tpu_custom_call.1} parent=5 // pred_check
        %p933 = pneg %p932
      $region58: #{tpu_custom_call.1} parent=5 // pred_check_branch
        %935 = sbr.rel (%p933) target = $region60
      $region59: #{tpu_custom_call.1} parent=5 // pred_region
        %s936 = ssub.s32 %s18, 2
        // Predicated region
        $region61: #{tpu_custom_call.1} parent=59 // pred_check
          %p937 = pneg %p136
        $region62: #{tpu_custom_call.1} parent=59 // pred_check_branch
          %939 = sbr.rel (%p937) target = $region64
        $region63: #{tpu_custom_call.1} parent=59 // pred_region
          %s940 = sand.u32 %s121, 1
          %s941 = scalar_lea.sflag [#allocation5], %s940
          %s942 = sand.u32 %s121, 1
          %s943 = smul.addr %s942, 16
          %s944 = scalar_lea.vmem [#allocation11], %s943
          %946 = dma.done %s941, 256
        $region64: #{tpu_custom_call.1} parent=59 // pred_fallthru
          _
      $region60: #{tpu_custom_call.1} parent=5 // pred_fallthru
        _
    $region6: #{tpu_custom_call.1} parent=1 // loop_footer
      %s22 = sadd.s32 1, %s18
    $region7: #{tpu_custom_call.1} parent=1 // loop_footer_branch
      %17 = sbr.rel target = $region3
    $region8: #{tpu_custom_call.1} parent=1 // loop_exit
      _
    %947 = vsyncpa [#allocation4], 1
    %s948 = scalar_lea.sflag [#allocation4], 1
    %949 = vsyncpa %s948, 1
    %950 = vsyncpa [#allocation7], 1
    %951 = vsyncpa [#allocation10], 1
    %952 = vsyncpa [#allocation5], 1
    %s953 = scalar_lea.sflag [#allocation5], 1
    %954 = vsyncpa %s953, 1

</llo_original>
